<compile_context>
chip_gen: v7x
topology: tpu7x:2x2x1
jax: 0.10.0
libtpu: 0.0.40
codegen_flags: <defaults>
</compile_context>

<pallas_src>
import math

import jax
import jax.numpy as jnp
from jax.experimental import pallas as pl
from jax.experimental.pallas import tpu as pltpu


def _layer_scale_kernel(gamma_ref, x_ref, o_ref):
    # gamma_ref: (1, dim_eff)  -- broadcast over rows (sublanes)
    # x_ref    : (tr, dim_eff)
    o_ref[...] = x_ref[...] * gamma_ref[...]


def _round_down(x: int, m: int) -> int:
    return (x // m) * m


def _round_up(x: int, m: int) -> int:
    return ((x + m - 1) // m) * m


def layer_scale(x: jax.Array, gamma: jax.Array, *, inplace: bool = False) -> jax.Array:
    """Apply y = x * gamma with gamma broadcast over the last axis of x."""
    orig_shape = x.shape
    dim = orig_shape[-1]
    assert gamma.shape == (dim,)

    x2 = x.reshape(-1, dim)
    rows = x2.shape[0]
    if rows == 0:
        return x

    # gamma is computed in x's dtype (matches timm usage under bf16 training).
    gamma_row = gamma.astype(x.dtype).reshape(1, dim)

    # ---- Lane-dense repack: make the last dim a multiple of 128 if we can. ----
    rows_eff, dim_eff, x_k = rows, dim, x2
    if dim % 128 != 0:
        k = math.lcm(dim, 128) // dim
        if k > 1 and rows % k == 0:
            rows_eff = rows // k
            dim_eff = dim * k
            x_k = x2.reshape(rows_eff, dim_eff)
            gamma_row = jnp.tile(gamma_row, (1, k))

    # ---- Row-tile selection: VMEM-budget driven, sublane-pack aligned. ----
    itemsize = jnp.dtype(x.dtype).itemsize
    sub = max(8, 32 // itemsize)              # 8 for f32, 16 for bf16, 32 for int8/fp8
    block_budget_bytes = 2 * 1024 * 1024      # ~2 MiB per (tr, dim_eff) block
    tr = max(sub, _round_down(block_budget_bytes // (dim_eff * itemsize), sub))
    if tr >= rows_eff:
        if rows_eff > sub:
            # Split into >=2 blocks so "parallel" can shard rows across v7x's 2 TCs.
            tr = _round_up(pl.cdiv(rows_eff, 2), sub)
        else:
            tr = rows_eff                      # full-extent block: always legal
    grid = (pl.cdiv(rows_eff, tr),)

    call_kwargs = {}
    if inplace:
        # Alias x (input index 1) to the output: no second HBM buffer.
        call_kwargs["input_output_aliases"] = {1: 0}

    out = pl.pallas_call(
        _layer_scale_kernel,
        out_shape=jax.ShapeDtypeStruct((rows_eff, dim_eff), x.dtype),
        grid=grid,
        in_specs=[
            pl.BlockSpec((1, dim_eff), lambda i: (0, 0)),   # gamma (same block every step)
            pl.BlockSpec((tr, dim_eff), lambda i: (i, 0)),  # x row tile
        ],
        out_specs=pl.BlockSpec((tr, dim_eff), lambda i: (i, 0)),
        compiler_params=pltpu.CompilerParams(
            dimension_semantics=("parallel",),
        ),
        **call_kwargs,
    )(gamma_row, x_k)

    return out.reshape(orig_shape)


class LayerScale:
    """JAX/Pallas port of the timm-style LayerScale module."""

    def __init__(self, dim: int, init_values: float = 1e-05, inplace: bool = False):
        # Deterministic init: gamma = init_values * ones(dim), matching nn.Parameter init.
        self.inplace = inplace
        self.gamma = init_values * jnp.ones((dim,), dtype=jnp.float32)

    def __call__(self, x: jax.Array) -> jax.Array:
        return layer_scale(x, self.gamma, inplace=self.inplace)


if __name__ == "__main__":
    key = jax.random.PRNGKey(0)

    # Main case (matches module usage): (batch, seq, dim) with dim=32.
    batch, seq, dim = 2, 8, 32
    x = jax.random.normal(key, (batch, seq, dim), dtype=jnp.float32)
    module = LayerScale(dim=dim, init_values=1e-05)
    y = jax.block_until_ready(module(x))
    ref = x * module.gamma
    assert y.shape == x.shape and y.dtype == x.dtype
    assert jnp.allclose(y, ref, atol=1e-6, rtol=1e-6)

    # Odd row count + dim not folding cleanly -> exercises partial-block path.
    x_odd = jax.random.normal(jax.random.PRNGKey(1), (3, 5, 48), dtype=jnp.float32)
    mod_odd = LayerScale(dim=48, init_values=0.5)
    y_odd = jax.block_until_ready(mod_odd(x_odd))
    assert jnp.allclose(y_odd, x_odd * mod_odd.gamma, atol=1e-6, rtol=1e-6)

    # bf16 path (sublane pack = 16) with inplace aliasing.
    x_bf = jax.random.normal(jax.random.PRNGKey(2), (2, 8, 256), dtype=jnp.bfloat16)
    mod_bf = LayerScale(dim=256, init_values=1e-05, inplace=True)
    y_bf = jax.block_until_ready(mod_bf(x_bf))
    ref_bf = x_bf * mod_bf.gamma.astype(jnp.bfloat16)
    assert y_bf.dtype == jnp.bfloat16
    assert jnp.allclose(y_bf.astype(jnp.float32), ref_bf.astype(jnp.float32),
                        atol=1e-2, rtol=1e-2)

    print("KERNEL_OK")
</pallas_src>

<mosaic_0001>
module attributes {stable_mosaic.version = 11 : i64} {
  func.func @_layer_scale_kernel(%arg0: i32, %arg1: memref<1x128xf32, #tpu.memory_space<vmem>>, %arg2: memref<4x128xf32, #tpu.memory_space<vmem>>, %arg3: memref<4x128xf32, #tpu.memory_space<vmem>>) attributes {dimension_semantics = [#tpu.dimension_semantics<parallel>], iteration_bounds = array<i64: 1>, scalar_prefetch = 0 : i64, scratch_operands = 0 : i64, tpu.core_type = #tpu.core_type<tc>, window_params = [{pipeline_mode = #tpu.pipeline_mode<synchronous>, transform_indices = @transform_0, window_bounds = array<i64: 1, 128>}, {transform_indices = @transform_1, window_bounds = array<i64: 4, 128>}, {transform_indices = @transform_2, window_bounds = array<i64: 4, 128>}]} {
    %c0 = arith.constant 0 : index
    %c0_0 = arith.constant 0 : index
    %0 = vector.load %arg2[%c0, %c0_0] : memref<4x128xf32, #tpu.memory_space<vmem>>, vector<4x128xf32>
    %c0_1 = arith.constant 0 : index
    %c0_2 = arith.constant 0 : index
    %1 = vector.load %arg1[%c0_1, %c0_2] : memref<1x128xf32, #tpu.memory_space<vmem>>, vector<1x128xf32>
    %2 = vector.broadcast %1 : vector<1x128xf32> to vector<4x128xf32>
    %3 = arith.mulf %0, %2 : vector<4x128xf32>
    %c0_3 = arith.constant 0 : index
    %c0_4 = arith.constant 0 : index
    %4 = vector.load %arg3[%c0_3, %c0_4] : memref<4x128xf32, #tpu.memory_space<vmem>>, vector<4x128xf32>
    tpu.vector_store %arg3[%c0_3, %c0_4], %3 {strides = array<i32>} : memref<4x128xf32, #tpu.memory_space<vmem>>, vector<4x128xf32>,
    return
  }
  func.func @transform_0(%arg0: i32) -> (i32, i32) {
    %c0_i32 = arith.constant 0 : i32
    %c0_i32_0 = arith.constant 0 : i32
    %c0_i32_1 = arith.constant 0 : i32
    return %c0_i32, %c0_i32_0 : i32, i32
  }
  func.func @transform_1(%arg0: i32) -> (i32, i32) {
    %c0_i32 = arith.constant 0 : i32
    %c0_i32_0 = arith.constant 0 : i32
    return %arg0, %c0_i32 : i32, i32
  }
  func.func @transform_2(%arg0: i32) -> (i32, i32) {
    %c0_i32 = arith.constant 0 : i32
    %c0_i32_0 = arith.constant 0 : i32
    return %arg0, %c0_i32 : i32, i32
  }
}

</mosaic_0001>

<llo_original>
// kernel: tpu_custom_call.1
$region0: #{tpu_custom_call.1}
  #allocation0 [shape = 'u32[]', space=smem, size = 0x4, offset = 0x4, fixed_abs, tag = 'smem constant byte address 0x4 - core index']
  #allocation1 [shape = 'u32[144,128]{1,0:T(1,128)}', space=vmem, size = 0x12000, scoped, tag = 'internal scratch']
  %s0 = inlined_call_operand.hbm [shape: f32[1,128], index: 0, kind: input, shape index: {}]
  %s1 = inlined_call_operand.hbm [shape: f32[4,128], index: 1, kind: input, shape index: {}]
  %s2 = inlined_call_operand.hbm [shape: f32[4,128], index: 2, kind: output, shape index: {}]
  %s3 = sld [smem:[#allocation0]]
  $region26: #{tpu_custom_call.1} parent=0
    _
  %s5 = ssub.s32 1, %s3
  %s6 = scalar_select 0, %s5, %s3
  $region1: #{tpu_custom_call.1} parent=0
    #allocation2 [shape = 'u8[512]{0}', space=vmem, size = 0x400, scoped, tag = 'input window, operand 0, single buffered']
    #allocation3 [shape = 's32[1]{0}', space=sflag, size = 0x4, scoped, tag = 'scoped memory for tpu_custom_call.1']
    #allocation4 [shape = 's32[1]{0}', space=sflag, size = 0x4, scoped, tag = 'scoped memory for tpu_custom_call.1']
    #allocation5 [shape = 'u8[2048]{0}', space=vmem, size = 0x800, scoped, tag = 'input window, operand 1, single buffered']
    #allocation6 [shape = 's32[1]{0}', space=sflag, size = 0x4, scoped, tag = 'scoped memory for tpu_custom_call.1']
    #allocation7 [shape = 'u8[2048]{0}', space=vmem, size = 0x800, scoped, tag = 'output window, operand 0, single buffered']
    %7 = vsyncpa [#allocation3], 0
    %8 = vsyncpa [#allocation6], 0
    %9 = vsyncpa [#allocation4], 0
    // Predicated region
    $region2: #{tpu_custom_call.1} parent=1 // pred_check
      _
    $region3: #{tpu_custom_call.1} parent=1 // pred_check_branch
      %11 = sbr.rel (0) target = $region5
    $region4: #{tpu_custom_call.1} parent=1 // pred_region
      %s13 = ssub.s32 16, 16
      %14 = vsyncadd [#allocation3], %s13
      %s16 = sshll.u32 [#allocation2], 4
      %s17 = int_to_ptr.vmem [resolvable:$true] %s16
      %19 = dma.hbm_to_vmem [thread:$0]  %s0, 16, %s17, [#allocation3]
    $region5: #{tpu_custom_call.1} parent=1 // pred_fallthru
      _
    // Predicated region
    $region6: #{tpu_custom_call.1} parent=1 // pred_check
      _
    $region7: #{tpu_custom_call.1} parent=1 // pred_check_branch
      %21 = sbr.rel (0) target = $region9
    $region8: #{tpu_custom_call.1} parent=1 // pred_region
      %s23 = ssub.s32 64, 64
      %24 = vsyncadd [#allocation6], %s23
      %s26 = sshll.u32 [#allocation5], 4
      %s27 = int_to_ptr.vmem [resolvable:$true] %s26
      %29 = dma.hbm_to_vmem [thread:$0]  %s1, 64, %s27, [#allocation6]
    $region9: #{tpu_custom_call.1} parent=1 // pred_fallthru
      _
    // Predicated region
    $region10: #{tpu_custom_call.1} parent=1 // pred_check
      _
    $region11: #{tpu_custom_call.1} parent=1 // pred_check_branch
      %31 = sbr.rel (0) target = $region13
    $region12: #{tpu_custom_call.1} parent=1 // pred_region
      %32 = dma.done [#allocation3], 16
    $region13: #{tpu_custom_call.1} parent=1 // pred_fallthru
      _
    // Predicated region
    $region14: #{tpu_custom_call.1} parent=1 // pred_check
      _
    $region15: #{tpu_custom_call.1} parent=1 // pred_check_branch
      %34 = sbr.rel (0) target = $region17
    $region16: #{tpu_custom_call.1} parent=1 // pred_region
      %35 = dma.done [#allocation6], 64
    $region17: #{tpu_custom_call.1} parent=1 // pred_fallthru
      _
    %v36 = vld [vmem:[#allocation5] sm:$0xf]
    %v37 = vld [vmem:[#allocation2] sm:$0x1]
    %v39 = vlaneseq
    %v40 = vshrl.u32 %v39, 7
    %v41 = vsub.s32 0, %v40
    %v42 = vrot.slane %v37, %v41
    %v44 = vmul.f32 %v36, %v42
    %45 = vst [vmem:[#allocation7] sm:$0xf] %v44
    // Predicated region
    $region18: #{tpu_custom_call.1} parent=1 // pred_check
      _
    $region19: #{tpu_custom_call.1} parent=1 // pred_check_branch
      %47 = sbr.rel (0) target = $region21
    $region20: #{tpu_custom_call.1} parent=1 // pred_region
      %s49 = ssub.s32 64, 64
      %50 = vsyncadd [#allocation4], %s49
      %s52 = sshll.u32 [#allocation7], 4
      %s53 = int_to_ptr.vmem [resolvable:$true] %s52
      %55 = dma.vmem_to_hbm [thread:$0]  %s53, 64, %s2, [#allocation4]
    $region21: #{tpu_custom_call.1} parent=1 // pred_fallthru
      _
    // Predicated region
    $region22: #{tpu_custom_call.1} parent=1 // pred_check
      _
    $region23: #{tpu_custom_call.1} parent=1 // pred_check_branch
      %57 = sbr.rel (0) target = $region25
    $region24: #{tpu_custom_call.1} parent=1 // pred_region
      %58 = dma.done [#allocation4], 64
    $region25: #{tpu_custom_call.1} parent=1 // pred_fallthru
      _
    %59 = vsyncpa [#allocation3], 1
    %60 = vsyncpa [#allocation6], 1
    %61 = vsyncpa [#allocation4], 1

</llo_original>
